<compile_context>
chip_gen: v6e
topology: v6e:2x2x1
jax: 0.10.0
libtpu: 0.0.40
codegen_flags: <defaults>
</compile_context>

<pallas_src>
import functools

import jax
import jax.numpy as jnp
from jax.experimental import pallas as pl
from jax.experimental.pallas import tpu as pltpu


def _bce_norm_kernel(feat_ref, tgt_ref, out_ref, loss_acc, tsum_acc, *, n_cols):
    """Grid (row_tile i [parallel], col_tile j [arbitrary]).

    Accumulates per-lane partial sums of the masked BCE loss and of the
    (non-negative) target across the feature axis, then in the epilogue
    reduces across lanes and writes per-row loss / clamp(pos, 1) lane-dense.
    """
    tile_m, tile_d = feat_ref.shape
    j = pl.program_id(1)

    @pl.when(j == 0)
    def _init():
        loss_acc[...] = jnp.zeros_like(loss_acc)
        tsum_acc[...] = jnp.zeros_like(tsum_acc)

    x = feat_ref[...].astype(jnp.float32)
    t = tgt_ref[...].astype(jnp.float32)

    # Mask out (a) feature-axis padding of the last tile and (b) ignored
    # entries (target < 0), matching `weight[target < 0] = 0` in PyTorch.
    col = jax.lax.broadcasted_iota(jnp.int32, (tile_m, tile_d), 1) + j * tile_d
    valid = jnp.logical_and(col < n_cols, t >= 0.0)

    y = jnp.where(valid, t, 0.0)
    # Numerically stable BCE with logits (PyTorch formulation):
    #   loss = max(x, 0) - x*y + log(1 + exp(-|x|))
    bce = jnp.maximum(x, 0.0) - x * y + jnp.log1p(jnp.exp(-jnp.abs(x)))
    bce = jnp.where(valid, bce, 0.0)

    # Per-lane partial sums: lane-aligned 128-wide slices + VALU adds only.
    # The cross-lane (XLU/MXU) reduce is deferred to the epilogue.
    n_lane_groups = tile_d // 128
    bce_p = bce[:, 0:128]
    y_p = y[:, 0:128]
    for c in range(1, n_lane_groups):
        sl = slice(c * 128, (c + 1) * 128)
        bce_p = bce_p + bce[:, sl]
        y_p = y_p + y[:, sl]
    loss_acc[...] += bce_p
    tsum_acc[...] += y_p

    @pl.when(j == pl.num_programs(1) - 1)
    def _epilogue():
        # Cross-lane reduce on the MXU: ones(1,128) . acc(tile_m,128)^T gives
        # per-row sums directly in a lane-dense (1, tile_m) layout.
        ones_row = jnp.ones((1, 128), jnp.float32)
        dn = (((1,), (1,)), ((), ()))
        loss_rows = jax.lax.dot_general(
            ones_row, loss_acc[...], dn,
            precision=jax.lax.Precision.HIGHEST,
            preferred_element_type=jnp.float32)
        tsum_rows = jax.lax.dot_general(
            ones_row, tsum_acc[...], dn,
            precision=jax.lax.Precision.HIGHEST,
            preferred_element_type=jnp.float32)
        out_ref[...] = loss_rows / jnp.maximum(tsum_rows, 1.0)


def _round_up(x, m):
    return ((x + m - 1) // m) * m


def _pick_tile_m(n, max_tile_m):
    n8 = _round_up(n, 8)
    if n8 <= max_tile_m:
        if n8 >= 256:
            # Split into >= 2 row tiles (multiple of 128 so the lane-dense
            # output block stays legal) to keep both v7x TensorCores busy.
            return _round_up(pl.cdiv(n8, 2), 128)
        return n8  # single row tile; block covers the full (rounded) extent
    return max_tile_m


def bce_logits_norm_by_each_positive(feature, target, *,
                                     max_tile_m=512, max_tile_d=2048):
    """JAX/Pallas equivalent of BCELogitsNormByEachPositive.forward (dense targets)."""
    assert max_tile_m % 128 == 0 and max_tile_d % 128 == 0
    n = feature.shape[0]
    assert target.shape[0] == n
    feat2d = feature.reshape(n, -1)
    tgt2d = target.reshape(n, -1)
    d = feat2d.shape[1]
    assert tgt2d.shape[1] == d

    tile_m = _pick_tile_m(n, max_tile_m)
    tile_d = min(_round_up(d, 128), max_tile_d)
    n_row_tiles = pl.cdiv(n, tile_m)
    n_col_tiles = pl.cdiv(d, tile_d)
    n_pad = n_row_tiles * tile_m

    # VMEM budget: 2 pipeline buffers per input + scratch + output, +50% slack,
    # clamped to <= 48 MiB so it also fits v7x's 64 MiB physical VMEM.
    block_in_bytes = tile_m * tile_d * (feat2d.dtype.itemsize + tgt2d.dtype.itemsize)
    need = 2 * block_in_bytes + 2 * tile_m * 128 * 4 + 2 * tile_m * 4
    vmem_limit = int(min(max(need * 3 // 2, 32 * 1024 * 1024), 48 * 1024 * 1024))

    per_row_padded = pl.pallas_call(
        functools.partial(_bce_norm_kernel, n_cols=d),
        out_shape=jax.ShapeDtypeStruct((1, n_pad), jnp.float32),
        grid_spec=pltpu.PrefetchScalarGridSpec(
            num_scalar_prefetch=0,
            grid=(n_row_tiles, n_col_tiles),
            in_specs=[
                pl.BlockSpec((tile_m, tile_d), lambda i, j: (i, j)),
                pl.BlockSpec((tile_m, tile_d), lambda i, j: (i, j)),
            ],
            out_specs=pl.BlockSpec((1, tile_m), lambda i, j: (0, i)),
            scratch_shapes=[
                pltpu.VMEM((tile_m, 128), jnp.float32),
                pltpu.VMEM((tile_m, 128), jnp.float32),
            ],
        ),
        compiler_params=pltpu.CompilerParams(
            dimension_semantics=("parallel", "arbitrary"),
            vmem_limit_bytes=vmem_limit,
        ),
    )(feat2d, tgt2d)

    per_row = per_row_padded[0, :n]   # drop padded rows before the mean
    return jnp.mean(per_row)


def _reference(feature, target):
    """Pure-JAX reference matching BCELogitsNormByEachPositive.forward_dense."""
    n = feature.shape[0]
    x = feature.reshape(n, -1).astype(jnp.float32)
    t = target.reshape(n, -1).astype(jnp.float32)
    valid = t >= 0.0
    y = jnp.where(valid, t, 0.0)
    loss = jnp.maximum(x, 0.0) - x * y + jnp.log1p(jnp.exp(-jnp.abs(x)))
    loss = jnp.where(valid, loss, 0.0)
    den = jnp.maximum(jnp.sum(y, axis=1), 1.0)
    return jnp.mean(jnp.sum(loss, axis=1) / den)


if __name__ == "__main__":
    key = jax.random.PRNGKey(0)
    k1, k2, k3 = jax.random.split(key, 3)

    # Case 1: small, awkward shapes (row/col padding + ignore mask, 3-D input).
    N, C, S = 5, 4, 50                       # flattens to (5, 200)
    feature = jax.random.normal(k1, (N, C, S), dtype=jnp.float32)
    labels = (jax.random.uniform(k2, (N, C, S)) > 0.7).astype(jnp.float32)
    ignore = jax.random.uniform(k3, (N, C, S)) < 0.1
    target = jnp.where(ignore, -1.0, labels)  # negative targets are ignored

    loss = jax.jit(bce_logits_norm_by_each_positive)(feature, target)
    jax.block_until_ready(loss)
    ref = _reference(feature, target)
    assert jnp.allclose(loss, ref, rtol=1e-5, atol=1e-5), (loss, ref)

    # Case 2: multi-tile grid (both row and feature axes tiled, padded edges).
    N2, D2 = 200, 300
    f2 = jax.random.normal(jax.random.PRNGKey(1), (N2, D2), dtype=jnp.float32)
    t2 = (jax.random.uniform(jax.random.PRNGKey(2), (N2, D2)) > 0.8).astype(jnp.float32)
    t2 = jnp.where(jax.random.uniform(jax.random.PRNGKey(3), (N2, D2)) < 0.05, -1.0, t2)
    loss2 = jax.jit(functools.partial(bce_logits_norm_by_each_positive,
                                      max_tile_m=128, max_tile_d=128))(f2, t2)
    jax.block_until_ready(loss2)
    ref2 = _reference(f2, t2)
    assert jnp.allclose(loss2, ref2, rtol=1e-5, atol=1e-5), (loss2, ref2)

    # Case 3: bf16 inputs (half the HBM traffic; kernel upcasts to f32 in-register).
    loss_bf16 = jax.jit(bce_logits_norm_by_each_positive)(
        f2.astype(jnp.bfloat16), t2.astype(jnp.bfloat16))
    jax.block_until_ready(loss_bf16)
    assert jnp.allclose(loss_bf16, ref2, rtol=5e-2, atol=5e-2), (loss_bf16, ref2)

    print("KERNEL_OK")
</pallas_src>

<mosaic_0001>
module attributes {stable_mosaic.version = 11 : i64} {
  func.func @_bce_norm_kernel(%arg0: i32, %arg1: i32, %arg2: memref<8x256xf32, #tpu.memory_space<vmem>>, %arg3: memref<8x256xf32, #tpu.memory_space<vmem>>, %arg4: memref<1x8xf32, #tpu.memory_space<vmem>>, %arg5: memref<8x128xf32, #tpu.memory_space<vmem>>, %arg6: memref<8x128xf32, #tpu.memory_space<vmem>>) attributes {dimension_semantics = [#tpu.dimension_semantics<parallel>, #tpu.dimension_semantics<arbitrary>], iteration_bounds = array<i64: 1, 1>, scalar_prefetch = 0 : i64, scratch_operands = 2 : i64, tpu.core_type = #tpu.core_type<tc>, window_params = [{transform_indices = @transform_0, window_bounds = array<i64: 8, 256>}, {transform_indices = @transform_1, window_bounds = array<i64: 8, 256>}, {transform_indices = @transform_2, window_bounds = array<i64: 1, 8>}]} {
    %c0_i32 = arith.constant 0 : i32
    %0 = arith.cmpi eq, %arg1, %c0_i32 : i32
    %1 = arith.extui %0 : i1 to i32
    %c0_i32_0 = arith.constant 0 : i32
    %2 = arith.cmpi ne, %1, %c0_i32_0 : i32
    scf.if %2 {
      %cst_18 = arith.constant 0.000000e+00 : f32
      %43 = vector.broadcast %cst_18 : f32 to vector<8x128xf32>
      %c0_19 = arith.constant 0 : index
      %c0_20 = arith.constant 0 : index
      %44 = vector.load %arg5[%c0_19, %c0_20] : memref<8x128xf32, #tpu.memory_space<vmem>>, vector<8x128xf32>
      tpu.vector_store %arg5[%c0_19, %c0_20], %43 {strides = array<i32>} : memref<8x128xf32, #tpu.memory_space<vmem>>, vector<8x128xf32>,
      %cst_21 = arith.constant 0.000000e+00 : f32
      %45 = vector.broadcast %cst_21 : f32 to vector<8x128xf32>
      %c0_22 = arith.constant 0 : index
      %c0_23 = arith.constant 0 : index
      %46 = vector.load %arg6[%c0_22, %c0_23] : memref<8x128xf32, #tpu.memory_space<vmem>>, vector<8x128xf32>
      tpu.vector_store %arg6[%c0_22, %c0_23], %45 {strides = array<i32>} : memref<8x128xf32, #tpu.memory_space<vmem>>, vector<8x128xf32>,
    } else {
    }
    %c0 = arith.constant 0 : index
    %c0_1 = arith.constant 0 : index
    %3 = vector.load %arg2[%c0, %c0_1] : memref<8x256xf32, #tpu.memory_space<vmem>>, vector<8x256xf32>
    %c0_2 = arith.constant 0 : index
    %c0_3 = arith.constant 0 : index
    %4 = vector.load %arg3[%c0_2, %c0_3] : memref<8x256xf32, #tpu.memory_space<vmem>>, vector<8x256xf32>
    %5 = tpu.iota {dimensions = array<i32: 1>} : vector<8x256xi32>
    %c256_i32 = arith.constant 256 : i32
    %6 = arith.muli %arg1, %c256_i32 : i32
    %7 = vector.broadcast %6 : i32 to vector<8x256xi32>
    %8 = arith.addi %5, %7 : vector<8x256xi32>
    %c200_i32 = arith.constant 200 : i32
    %9 = vector.broadcast %c200_i32 : i32 to vector<8x256xi32>
    %10 = arith.cmpi slt, %8, %9 : vector<8x256xi32>
    %cst = arith.constant 0.000000e+00 : f32
    %11 = vector.broadcast %cst : f32 to vector<8x256xf32>
    %12 = arith.cmpf oge, %4, %11 : vector<8x256xf32>
    %13 = arith.andi %10, %12 : vector<8x256xi1>
    %cst_4 = arith.constant 0.000000e+00 : f32
    %14 = vector.broadcast %cst_4 : f32 to vector<8x256xf32>
    %15 = arith.select %13, %4, %14 : vector<8x256xi1>, vector<8x256xf32>
    %cst_5 = arith.constant 0.000000e+00 : f32
    %16 = vector.broadcast %cst_5 : f32 to vector<8x256xf32>
    %17 = arith.maximumf %3, %16 : vector<8x256xf32>
    %18 = arith.mulf %3, %15 : vector<8x256xf32>
    %19 = arith.subf %17, %18 : vector<8x256xf32>
    %20 = math.absf %3 : vector<8x256xf32>
    %cst_6 = arith.constant 0.000000e+00 : f32
    %21 = vector.broadcast %cst_6 : f32 to vector<8x256xf32>
    %22 = arith.subf %21, %20 : vector<8x256xf32>
    %23 = math.exp %22 : vector<8x256xf32>
    %24 = math.log1p %23 : vector<8x256xf32>
    %25 = arith.addf %19, %24 : vector<8x256xf32>
    %cst_7 = arith.constant 0.000000e+00 : f32
    %26 = vector.broadcast %cst_7 : f32 to vector<8x256xf32>
    %27 = arith.select %13, %25, %26 : vector<8x256xi1>, vector<8x256xf32>
    %28 = vector.extract_strided_slice %27 {offsets = [0, 0], sizes = [8, 128], strides = [1, 1]} : vector<8x256xf32> to vector<8x128xf32>
    %29 = vector.extract_strided_slice %15 {offsets = [0, 0], sizes = [8, 128], strides = [1, 1]} : vector<8x256xf32> to vector<8x128xf32>
    %30 = vector.extract_strided_slice %27 {offsets = [0, 128], sizes = [8, 128], strides = [1, 1]} : vector<8x256xf32> to vector<8x128xf32>
    %31 = arith.addf %28, %30 : vector<8x128xf32>
    %32 = vector.extract_strided_slice %15 {offsets = [0, 128], sizes = [8, 128], strides = [1, 1]} : vector<8x256xf32> to vector<8x128xf32>
    %33 = arith.addf %29, %32 : vector<8x128xf32>
    %c0_8 = arith.constant 0 : index
    %c0_9 = arith.constant 0 : index
    %34 = vector.load %arg5[%c0_8, %c0_9] : memref<8x128xf32, #tpu.memory_space<vmem>>, vector<8x128xf32>
    %35 = arith.addf %34, %31 : vector<8x128xf32>
    %c0_10 = arith.constant 0 : index
    %c0_11 = arith.constant 0 : index
    %36 = vector.load %arg5[%c0_10, %c0_11] : memref<8x128xf32, #tpu.memory_space<vmem>>, vector<8x128xf32>
    tpu.vector_store %arg5[%c0_10, %c0_11], %35 {strides = array<i32>} : memref<8x128xf32, #tpu.memory_space<vmem>>, vector<8x128xf32>,
    %c0_12 = arith.constant 0 : index
    %c0_13 = arith.constant 0 : index
    %37 = vector.load %arg6[%c0_12, %c0_13] : memref<8x128xf32, #tpu.memory_space<vmem>>, vector<8x128xf32>
    %38 = arith.addf %37, %33 : vector<8x128xf32>
    %c0_14 = arith.constant 0 : index
    %c0_15 = arith.constant 0 : index
    %39 = vector.load %arg6[%c0_14, %c0_15] : memref<8x128xf32, #tpu.memory_space<vmem>>, vector<8x128xf32>
    tpu.vector_store %arg6[%c0_14, %c0_15], %38 {strides = array<i32>} : memref<8x128xf32, #tpu.memory_space<vmem>>, vector<8x128xf32>,
    %c0_i32_16 = arith.constant 0 : i32
    %40 = arith.cmpi eq, %arg1, %c0_i32_16 : i32
    %41 = arith.extui %40 : i1 to i32
    %c0_i32_17 = arith.constant 0 : i32
    %42 = arith.cmpi ne, %41, %c0_i32_17 : i32
    scf.if %42 {
      %cst_18 = arith.constant 1.000000e+00 : f32
      %43 = vector.broadcast %cst_18 : f32 to vector<1x128xf32>
      %c0_19 = arith.constant 0 : index
      %c0_20 = arith.constant 0 : index
      %44 = vector.load %arg5[%c0_19, %c0_20] : memref<8x128xf32, #tpu.memory_space<vmem>>, vector<8x128xf32>
      %cst_21 = arith.constant dense<0.000000e+00> : vector<1x8xf32>
      %45 = tpu.matmul %43, %44, %cst_21 {dimension_numbers = #tpu.dot_dimension_numbers<[1], [1], [0], [0], [0, 0, 1, 0], [], []>, precision = #tpu.contract_precision<fp32>} : vector<1x128xf32>, vector<8x128xf32>, vector<1x8xf32> -> vector<1x8xf32>
      %c0_22 = arith.constant 0 : index
      %c0_23 = arith.constant 0 : index
      %46 = vector.load %arg6[%c0_22, %c0_23] : memref<8x128xf32, #tpu.memory_space<vmem>>, vector<8x128xf32>
      %cst_24 = arith.constant dense<0.000000e+00> : vector<1x8xf32>
      %47 = tpu.matmul %43, %46, %cst_24 {dimension_numbers = #tpu.dot_dimension_numbers<[1], [1], [0], [0], [0, 0, 1, 0], [], []>, precision = #tpu.contract_precision<fp32>} : vector<1x128xf32>, vector<8x128xf32>, vector<1x8xf32> -> vector<1x8xf32>
      %cst_25 = arith.constant 1.000000e+00 : f32
      %48 = vector.broadcast %cst_25 : f32 to vector<1x8xf32>
      %49 = arith.maximumf %47, %48 : vector<1x8xf32>
      %50 = arith.divf %45, %49 : vector<1x8xf32>
      %c0_26 = arith.constant 0 : index
      %c0_27 = arith.constant 0 : index
      %51 = vector.load %arg4[%c0_26, %c0_27] : memref<1x8xf32, #tpu.memory_space<vmem>>, vector<1x8xf32>
      tpu.vector_store %arg4[%c0_26, %c0_27], %50 {strides = array<i32>} : memref<1x8xf32, #tpu.memory_space<vmem>>, vector<1x8xf32>,
    } else {
    }
    return
  }
  func.func @transform_0(%arg0: i32, %arg1: i32) -> (i32, i32) {
    %c0_i32 = arith.constant 0 : i32
    return %arg0, %arg1 : i32, i32
  }
  func.func @transform_1(%arg0: i32, %arg1: i32) -> (i32, i32) {
    %c0_i32 = arith.constant 0 : i32
    return %arg0, %arg1 : i32, i32
  }
  func.func @transform_2(%arg0: i32, %arg1: i32) -> (i32, i32) {
    %c0_i32 = arith.constant 0 : i32
    %c0_i32_0 = arith.constant 0 : i32
    return %c0_i32, %arg0 : i32, i32
  }
}

</mosaic_0001>

<llo_original>
// kernel: bce_logits_norm_by_each_positive.1
$region0: #{bce_logits_norm_by_each_positive.1}
  #allocation0 [shape = 'u32[]', space=smem, size = 0x4, offset = 0x4, fixed_abs, tag = 'smem constant byte address 0x4 - core index']
  #allocation1 [shape = 'u32[144,128]{1,0:T(1,128)}', space=vmem, size = 0x12000, scoped, tag = 'internal scratch']
  #allocation2 [shape = 'f32[8,128]{1,0:T(8,128)}', space=vmem, size = 0x1000, scoped, tag = 'scratch operand']
  #allocation3 [shape = 'f32[8,128]{1,0:T(8,128)}', space=vmem, size = 0x1000, scoped, tag = 'scratch operand']
  %s0 = inlined_call_operand.vmem [shape: f32[5,200], index: 0, kind: input, shape index: {}]
  %s1 = inlined_call_operand.vmem [shape: f32[5,200], index: 1, kind: input, shape index: {}]
  %s2 = inlined_call_operand.vmem [shape: f32[1,8], index: 2, kind: output, shape index: {}]
  %s3 = sld [smem:[#allocation0]]
  $region26: #{bce_logits_norm_by_each_positive.1} parent=0
    _
  %s5 = ssub.s32 1, %s3
  %s6 = scalar_select 0, %s5, %s3
  // Predicated region
  $region2: #{bce_logits_norm_by_each_positive.1} parent=0 // pred_check
    _
  $region3: #{bce_logits_norm_by_each_positive.1} parent=0 // pred_check_branch
    %8 = sbr.rel (0) target = $region5
  $region4: #{bce_logits_norm_by_each_positive.1} parent=0 // pred_region
    _
  $region5: #{bce_logits_norm_by_each_positive.1} parent=0 // pred_fallthru
    _
  // Predicated region
  $region6: #{bce_logits_norm_by_each_positive.1} parent=0 // pred_check
    _
  $region7: #{bce_logits_norm_by_each_positive.1} parent=0 // pred_check_branch
    %10 = sbr.rel (0) target = $region9
  $region8: #{bce_logits_norm_by_each_positive.1} parent=0 // pred_region
    _
  $region9: #{bce_logits_norm_by_each_positive.1} parent=0 // pred_fallthru
    _
  %p11 = scmp.eq.s32.totalorder 0, 0
  // Predicated region
  $region10: #{bce_logits_norm_by_each_positive.1} parent=0 // pred_check
    %p12 = pneg %p11
  $region11: #{bce_logits_norm_by_each_positive.1} parent=0 // pred_check_branch
    %14 = sbr.rel (%p12) target = $region13
  $region12: #{bce_logits_norm_by_each_positive.1} parent=0 // pred_region
    %15 = vst [vmem:[#allocation2] sm:$0xff] 0.0
    %16 = vst [vmem:[#allocation3] sm:$0xff] 0.0
  $region13: #{bce_logits_norm_by_each_positive.1} parent=0 // pred_fallthru
    _
  %v17 = vld [vmem:[%s0] sm:$0xff]
  %v18 = vld [vmem:[%s0 + $0x8] sm:$0xff]
  %v19 = vld [vmem:[%s1] sm:$0xff]
  %v20 = vld [vmem:[%s1 + $0x8] sm:$0xff]
  %v21 = vlaneseq
  %v22 = vand.u32 %v21, 127
  %v23 = vadd.s32 %v22, 128
  %s24 = smul.u32 0, 256
  %v25 = vstv %s24
  %v26 = vadd.s32 %v22, %v25
  %v27 = vadd.s32 %v23, %v25
  %vm28 = vcmp.lt.s32.totalorder %v26, 200
  %vm29 = vcmp.lt.s32.totalorder %v27, 200
  %vm30 = vcmp.ge.f32.partialorder %v19, 0.0
  %vm31 = vcmp.ge.f32.partialorder %v20, 0.0
  %vm32 = vmand %vm28, %vm30
  %vm33 = vmand %vm29, %vm31
  %v34 = vsel %vm32, %v19, 0.0
  %v35 = vsel %vm33, %v20, 0.0
  %v36 = vmax.f32 %v17, 0.0
  %v37 = vmax.f32 %v18, 0.0
  %v38 = vmul.f32 %v17, %v34
  %v39 = vmul.f32 %v18, %v35
  %v40 = vsub.f32 %v36, %v38
  %v41 = vsub.f32 %v37, %v39
  %v42 = vand.u32 2147483647, %v17
  %v43 = vand.u32 2147483647, %v18
  %v44 = vsub.f32 0.0, %v42
  %v45 = vsub.f32 0.0, %v43
  %v46 = vmul.f32 %v44, 1.442695
  %v47 = vpow.pop %v46
  %v48 = vmul.f32 %v45, 1.442695
  %v49 = vpow.pop %v48
  %v50 = vadd.f32 %v47, 1.0
  %v51 = vlog2.pop %v50
  %v52 = vmul.f32 %v51, 0.6931472
  %v53 = vmul.f32 -0.5, %v47
  %v54 = vadd.f32 %v53, 1.0
  %v55 = vmul.f32 %v54, %v47
  %v56 = vand.u32 2147483647, %v47
  %vm57 = vcmp.lt.f32.partialorder %v56, 0.0004427343
  %v58 = vsel %vm57, %v55, %v52
  %v59 = vadd.f32 %v49, 1.0
  %v60 = vlog2.pop %v59
  %v61 = vmul.f32 %v60, 0.6931472
  %v62 = vmul.f32 -0.5, %v49
  %v63 = vadd.f32 %v62, 1.0
  %v64 = vmul.f32 %v63, %v49
  %v65 = vand.u32 2147483647, %v49
  %vm66 = vcmp.lt.f32.partialorder %v65, 0.0004427343
  %v67 = vsel %vm66, %v64, %v61
  %v68 = vadd.f32 %v40, %v58
  %v69 = vadd.f32 %v41, %v67
  %v70 = vsel %vm32, %v68, 0.0
  %v71 = vsel %vm33, %v69, 0.0
  %v72 = vadd.f32 %v70, %v71
  %v73 = vadd.f32 %v34, %v35
  %v74 = vld [vmem:[#allocation2] sm:$0xff]
  %v75 = vadd.f32 %v74, %v72
  %76 = vst [vmem:[#allocation2] sm:$0xff] %v75
  %v77 = vld [vmem:[#allocation3] sm:$0xff]
  %v78 = vadd.f32 %v77, %v73
  %79 = vst [vmem:[#allocation3] sm:$0xff] %v78
  // Predicated region
  $region14: #{bce_logits_norm_by_each_positive.1} parent=0 // pred_check
    %p80 = pneg %p11
  $region15: #{bce_logits_norm_by_each_positive.1} parent=0 // pred_check_branch
    %82 = sbr.rel (%p80) target = $region17
  $region16: #{bce_logits_norm_by_each_positive.1} parent=0 // pred_region
    %v83 = vld [vmem:[#allocation2] sm:$0xff]
    %84 = vmatprep.subr.mxu0 0.0
    %85 = vmatpush1.xpose.msra.mxu0 0.0
    %86 = vmatprep.subr.mxu0 0.0
    %87 = vmatpush1.xpose.msra.mxu0 0.0
    %88 = vmatprep.subr.mxu0 0.0
    %89 = vmatpush1.xpose.msra.mxu0 0.0
    %90 = vmatprep.subr.mxu0 0.0
    %91 = vmatpush1.xpose.msra.mxu0 0.0
    %92 = vmatprep.subr.mxu0 0.0
    %93 = vmatpush1.xpose.msra.mxu0 0.0
    %94 = vmatprep.subr.mxu0 0.0
    %95 = vmatpush1.xpose.msra.mxu0 0.0
    %96 = vmatprep.subr.mxu0 0.0
    %97 = vmatpush1.xpose.msra.mxu0 0.0
    %98 = vmatprep.subr.mxu0 0.0
    %99 = vmatpush1.xpose.msra.mxu0 0.0
    %100 = vmatprep.subr.mxu0 0.0
    %101 = vmatpush1.xpose.msra.mxu0 0.0
    %102 = vmatprep.subr.mxu0 0.0
    %103 = vmatpush1.xpose.msra.mxu0 0.0
    %104 = vmatprep.subr.mxu0 0.0
    %105 = vmatpush1.xpose.msra.mxu0 0.0
    %106 = vmatprep.subr.mxu0 0.0
    %107 = vmatpush1.xpose.msra.mxu0 0.0
    %108 = vmatprep.subr.mxu0 0.0
    %109 = vmatpush1.xpose.msra.mxu0 0.0
    %110 = vmatprep.subr.mxu0 0.0
    %111 = vmatpush1.xpose.msra.mxu0 0.0
    %112 = vmatprep.subr.mxu0 0.0
    %113 = vmatpush1.xpose.msra.mxu0 0.0
    %114 = vmatprep.subr.mxu0 0.0
    %v115 = vand.u32 %v83, 4294901760
    %116 = vmatpush1.xpose.msra.mxu0 %v115
    %117 = vmatprep.subr.mxu0 0.0
    %118 = vmatpush2.xpose.msra.mxu0 0.0
    %119 = vmatprep.subr.mxu0 0.0
    %120 = vmatpush2.xpose.msra.mxu0 0.0
    %121 = vmatprep.subr.mxu0 0.0
    %122 = vmatpush2.xpose.msra.mxu0 0.0
    %123 = vmatprep.subr.mxu0 0.0
    %124 = vmatpush2.xpose.msra.mxu0 0.0
    %125 = vmatprep.subr.mxu0 0.0
    %126 = vmatpush2.xpose.msra.mxu0 0.0
    %127 = vmatprep.subr.mxu0 0.0
    %128 = vmatpush2.xpose.msra.mxu0 0.0
    %129 = vmatprep.subr.mxu0 0.0
    %130 = vmatpush2.xpose.msra.mxu0 0.0
    %131 = vmatprep.subr.mxu0 0.0
    %132 = vmatpush2.xpose.msra.mxu0 0.0
    %133 = vmatprep.subr.mxu0 0.0
    %134 = vmatpush2.xpose.msra.mxu0 0.0
    %135 = vmatprep.subr.mxu0 0.0
    %136 = vmatpush2.xpose.msra.mxu0 0.0
    %137 = vmatprep.subr.mxu0 0.0
    %138 = vmatpush2.xpose.msra.mxu0 0.0
    %139 = vmatprep.subr.mxu0 0.0
    %140 = vmatpush2.xpose.msra.mxu0 0.0
    %141 = vmatprep.subr.mxu0 0.0
    %142 = vmatpush2.xpose.msra.mxu0 0.0
    %143 = vmatprep.subr.mxu0 0.0
    %144 = vmatpush2.xpose.msra.mxu0 0.0
    %145 = vmatprep.subr.mxu0 0.0
    %146 = vmatpush2.xpose.msra.mxu0 0.0
    %147 = vmatprep.subr.mxu0 0.0
    %148 = vmatpush2.xpose.msra.mxu0 0.0
    %149 = vmatprep.mubr.f32.mxu0 0.0
    %150 = vmatmul.mubr.f32.gmra.mxu0 0.0
    %v151 = vpop.f32.mrf.mxu0
    %v152 = vadd.f32 0.0, %v151
    %v153 = vpop.f32.mrf.mxu0
    %154 = vdwg.mxu0
    %155 = vmatprep.subr.mxu0 0.0
    %156 = vmatpush1.xpose.msra.mxu0 0.0
    %157 = vmatprep.subr.mxu0 0.0
    %158 = vmatpush1.xpose.msra.mxu0 0.0
    %159 = vmatprep.subr.mxu0 0.0
    %160 = vmatpush1.xpose.msra.mxu0 0.0
    %161 = vmatprep.subr.mxu0 0.0
    %162 = vmatpush1.xpose.msra.mxu0 0.0
    %163 = vmatprep.subr.mxu0 0.0
    %164 = vmatpush1.xpose.msra.mxu0 0.0
    %165 = vmatprep.subr.mxu0 0.0
    %166 = vmatpush1.xpose.msra.mxu0 0.0
    %167 = vmatprep.subr.mxu0 0.0
    %168 = vmatpush1.xpose.msra.mxu0 0.0
    %169 = vmatprep.subr.mxu0 0.0
    %170 = vmatpush1.xpose.msra.mxu0 0.0
    %171 = vmatprep.subr.mxu0 0.0
    %172 = vmatpush1.xpose.msra.mxu0 0.0
    %173 = vmatprep.subr.mxu0 0.0
    %174 = vmatpush1.xpose.msra.mxu0 0.0
    %175 = vmatprep.subr.mxu0 0.0
    %176 = vmatpush1.xpose.msra.mxu0 0.0
    %177 = vmatprep.subr.mxu0 0.0
    %178 = vmatpush1.xpose.msra.mxu0 0.0
    %179 = vmatprep.subr.mxu0 0.0
    %180 = vmatpush1.xpose.msra.mxu0 0.0
    %181 = vmatprep.subr.mxu0 0.0
    %182 = vmatpush1.xpose.msra.mxu0 0.0
    %183 = vmatprep.subr.mxu0 0.0
    %184 = vmatpush1.xpose.msra.mxu0 0.0
    %185 = vmatprep.subr.mxu0 0.0
    %v186 = vand.u32 %v83, 4294901760
    %v187 = vsub.f32 %v83, %v186
    %v188 = vand.u32 %v187, 4294901760
    %v189 = vsub.f32 %v187, %v188
    %v190 = vand.u32 %v189, 4294901760
    %191 = vmatpush1.xpose.msra.mxu0 %v190
    %192 = vmatprep.subr.mxu0 0.0
    %193 = vmatpush2.xpose.msra.mxu0 0.0
    %194 = vmatprep.subr.mxu0 0.0
    %195 = vmatpush2.xpose.msra.mxu0 0.0
    %196 = vmatprep.subr.mxu0 0.0
    %197 = vmatpush2.xpose.msra.mxu0 0.0
    %198 = vmatprep.subr.mxu0 0.0
    %199 = vmatpush2.xpose.msra.mxu0 0.0
    %200 = vmatprep.subr.mxu0 0.0
    %201 = vmatpush2.xpose.msra.mxu0 0.0
    %202 = vmatprep.subr.mxu0 0.0
    %203 = vmatpush2.xpose.msra.mxu0 0.0
    %204 = vmatprep.subr.mxu0 0.0
    %205 = vmatpush2.xpose.msra.mxu0 0.0
    %206 = vmatprep.subr.mxu0 0.0
    %207 = vmatpush2.xpose.msra.mxu0 0.0
    %208 = vmatprep.subr.mxu0 0.0
    %209 = vmatpush2.xpose.msra.mxu0 0.0
    %210 = vmatprep.subr.mxu0 0.0
    %211 = vmatpush2.xpose.msra.mxu0 0.0
    %212 = vmatprep.subr.mxu0 0.0
    %213 = vmatpush2.xpose.msra.mxu0 0.0
    %214 = vmatprep.subr.mxu0 0.0
    %215 = vmatpush2.xpose.msra.mxu0 0.0
    %216 = vmatprep.subr.mxu0 0.0
    %217 = vmatpush2.xpose.msra.mxu0 0.0
    %218 = vmatprep.subr.mxu0 0.0
    %219 = vmatpush2.xpose.msra.mxu0 0.0
    %220 = vmatprep.subr.mxu0 0.0
    %221 = vmatpush2.xpose.msra.mxu0 0.0
    %222 = vmatprep.subr.mxu0 0.0
    %223 = vmatpush2.xpose.msra.mxu0 0.0
    %224 = vmatprep.mubr.f32.mxu0 0.0
    %225 = vmatmul.mubr.f32.gmra.mxu0 1.0
    %v226 = vpop.f32.mrf.mxu0
    %v227 = vadd.f32 %v152, %v226
    %v228 = vpop.f32.mrf.mxu0
    %229 = vdwg.mxu0
    %230 = vmatprep.subr.mxu0 0.0
    %231 = vmatpush1.xpose.msra.mxu0 0.0
    %232 = vmatprep.subr.mxu0 0.0
    %233 = vmatpush1.xpose.msra.mxu0 0.0
    %234 = vmatprep.subr.mxu0 0.0
    %235 = vmatpush1.xpose.msra.mxu0 0.0
    %236 = vmatprep.subr.mxu0 0.0
    %237 = vmatpush1.xpose.msra.mxu0 0.0
    %238 = vmatprep.subr.mxu0 0.0
    %239 = vmatpush1.xpose.msra.mxu0 0.0
    %240 = vmatprep.subr.mxu0 0.0
    %241 = vmatpush1.xpose.msra.mxu0 0.0
    %242 = vmatprep.subr.mxu0 0.0
    %243 = vmatpush1.xpose.msra.mxu0 0.0
    %244 = vmatprep.subr.mxu0 0.0
    %245 = vmatpush1.xpose.msra.mxu0 0.0
    %246 = vmatprep.subr.mxu0 0.0
    %247 = vmatpush1.xpose.msra.mxu0 0.0
    %248 = vmatprep.subr.mxu0 0.0
    %249 = vmatpush1.xpose.msra.mxu0 0.0
    %250 = vmatprep.subr.mxu0 0.0
    %251 = vmatpush1.xpose.msra.mxu0 0.0
    %252 = vmatprep.subr.mxu0 0.0
    %253 = vmatpush1.xpose.msra.mxu0 0.0
    %254 = vmatprep.subr.mxu0 0.0
    %255 = vmatpush1.xpose.msra.mxu0 0.0
    %256 = vmatprep.subr.mxu0 0.0
    %257 = vmatpush1.xpose.msra.mxu0 0.0
    %258 = vmatprep.subr.mxu0 0.0
    %259 = vmatpush1.xpose.msra.mxu0 0.0
    %260 = vmatprep.subr.mxu0 0.0
    %v261 = vand.u32 %v83, 4294901760
    %v262 = vsub.f32 %v83, %v261
    %263 = vmatpush1.xpose.msra.mxu0 %v262
    %264 = vmatprep.subr.mxu0 0.0
    %265 = vmatpush2.xpose.msra.mxu0 0.0
    %266 = vmatprep.subr.mxu0 0.0
    %267 = vmatpush2.xpose.msra.mxu0 0.0
    %268 = vmatprep.subr.mxu0 0.0
    %269 = vmatpush2.xpose.msra.mxu0 0.0
    %270 = vmatprep.subr.mxu0 0.0
    %271 = vmatpush2.xpose.msra.mxu0 0.0
    %272 = vmatprep.subr.mxu0 0.0
    %273 = vmatpush2.xpose.msra.mxu0 0.0
    %274 = vmatprep.subr.mxu0 0.0
    %275 = vmatpush2.xpose.msra.mxu0 0.0
    %276 = vmatprep.subr.mxu0 0.0
    %277 = vmatpush2.xpose.msra.mxu0 0.0
    %278 = vmatprep.subr.mxu0 0.0
    %279 = vmatpush2.xpose.msra.mxu0 0.0
    %280 = vmatprep.subr.mxu0 0.0
    %281 = vmatpush2.xpose.msra.mxu0 0.0
    %282 = vmatprep.subr.mxu0 0.0
    %283 = vmatpush2.xpose.msra.mxu0 0.0
    %284 = vmatprep.subr.mxu0 0.0
    %285 = vmatpush2.xpose.msra.mxu0 0.0
    %286 = vmatprep.subr.mxu0 0.0
    %287 = vmatpush2.xpose.msra.mxu0 0.0
    %288 = vmatprep.subr.mxu0 0.0
    %289 = vmatpush2.xpose.msra.mxu0 0.0
    %290 = vmatprep.subr.mxu0 0.0
    %291 = vmatpush2.xpose.msra.mxu0 0.0
    %292 = vmatprep.subr.mxu0 0.0
    %293 = vmatpush2.xpose.msra.mxu0 0.0
    %294 = vmatprep.subr.mxu0 0.0
    %295 = vmatpush2.xpose.msra.mxu0 0.0
    %296 = vmatprep.mubr.f32.mxu0 0.0
    %297 = vmatmul.mubr.f32.gmra.mxu0 0.0
    %v298 = vpop.f32.mrf.mxu0
    %v299 = vadd.f32 %v227, %v298
    %v300 = vpop.f32.mrf.mxu0
    %301 = vdwg.mxu0
    %302 = vmatprep.subr.mxu0 0.0
    %303 = vmatpush1.xpose.msra.mxu0 0.0
    %304 = vmatprep.subr.mxu0 0.0
    %305 = vmatpush1.xpose.msra.mxu0 0.0
    %306 = vmatprep.subr.mxu0 0.0
    %307 = vmatpush1.xpose.msra.mxu0 0.0
    %308 = vmatprep.subr.mxu0 0.0
    %309 = vmatpush1.xpose.msra.mxu0 0.0
    %310 = vmatprep.subr.mxu0 0.0
    %311 = vmatpush1.xpose.msra.mxu0 0.0
    %312 = vmatprep.subr.mxu0 0.0
    %313 = vmatpush1.xpose.msra.mxu0 0.0
    %314 = vmatprep.subr.mxu0 0.0
    %315 = vmatpush1.xpose.msra.mxu0 0.0
    %316 = vmatprep.subr.mxu0 0.0
    %317 = vmatpush1.xpose.msra.mxu0 0.0
    %318 = vmatprep.subr.mxu0 0.0
    %319 = vmatpush1.xpose.msra.mxu0 0.0
    %320 = vmatprep.subr.mxu0 0.0
    %321 = vmatpush1.xpose.msra.mxu0 0.0
    %322 = vmatprep.subr.mxu0 0.0
    %323 = vmatpush1.xpose.msra.mxu0 0.0
    %324 = vmatprep.subr.mxu0 0.0
    %325 = vmatpush1.xpose.msra.mxu0 0.0
    %326 = vmatprep.subr.mxu0 0.0
    %327 = vmatpush1.xpose.msra.mxu0 0.0
    %328 = vmatprep.subr.mxu0 0.0
    %329 = vmatpush1.xpose.msra.mxu0 0.0
    %330 = vmatprep.subr.mxu0 0.0
    %331 = vmatpush1.xpose.msra.mxu0 0.0
    %332 = vmatprep.subr.mxu0 0.0
    %v333 = vand.u32 %v83, 4294901760
    %334 = vmatpush1.xpose.msra.mxu0 %v333
    %335 = vmatprep.subr.mxu0 0.0
    %336 = vmatpush2.xpose.msra.mxu0 0.0
    %337 = vmatprep.subr.mxu0 0.0
    %338 = vmatpush2.xpose.msra.mxu0 0.0
    %339 = vmatprep.subr.mxu0 0.0
    %340 = vmatpush2.xpose.msra.mxu0 0.0
    %341 = vmatprep.subr.mxu0 0.0
    %342 = vmatpush2.xpose.msra.mxu0 0.0
    %343 = vmatprep.subr.mxu0 0.0
    %344 = vmatpush2.xpose.msra.mxu0 0.0
    %345 = vmatprep.subr.mxu0 0.0
    %346 = vmatpush2.xpose.msra.mxu0 0.0
    %347 = vmatprep.subr.mxu0 0.0
    %348 = vmatpush2.xpose.msra.mxu0 0.0
    %349 = vmatprep.subr.mxu0 0.0
    %350 = vmatpush2.xpose.msra.mxu0 0.0
    %351 = vmatprep.subr.mxu0 0.0
    %352 = vmatpush2.xpose.msra.mxu0 0.0
    %353 = vmatprep.subr.mxu0 0.0
    %354 = vmatpush2.xpose.msra.mxu0 0.0
    %355 = vmatprep.subr.mxu0 0.0
    %356 = vmatpush2.xpose.msra.mxu0 0.0
    %357 = vmatprep.subr.mxu0 0.0
    %358 = vmatpush2.xpose.msra.mxu0 0.0
    %359 = vmatprep.subr.mxu0 0.0
    %360 = vmatpush2.xpose.msra.mxu0 0.0
    %361 = vmatprep.subr.mxu0 0.0
    %362 = vmatpush2.xpose.msra.mxu0 0.0
    %363 = vmatprep.subr.mxu0 0.0
    %364 = vmatpush2.xpose.msra.mxu0 0.0
    %365 = vmatprep.subr.mxu0 0.0
    %366 = vmatpush2.xpose.msra.mxu0 0.0
    %367 = vmatprep.mubr.f32.mxu0 0.0
    %368 = vmatmul.mubr.f32.gmra.mxu0 0.0
    %v369 = vpop.f32.mrf.mxu0
    %v370 = vadd.f32 %v299, %v369
    %v371 = vpop.f32.mrf.mxu0
    %372 = vdwg.mxu0
    %373 = vmatprep.subr.mxu0 0.0
    %374 = vmatpush1.xpose.msra.mxu0 0.0
    %375 = vmatprep.subr.mxu0 0.0
    %376 = vmatpush1.xpose.msra.mxu0 0.0
    %377 = vmatprep.subr.mxu0 0.0
    %378 = vmatpush1.xpose.msra.mxu0 0.0
    %379 = vmatprep.subr.mxu0 0.0
    %380 = vmatpush1.xpose.msra.mxu0 0.0
    %381 = vmatprep.subr.mxu0 0.0
    %382 = vmatpush1.xpose.msra.mxu0 0.0
    %383 = vmatprep.subr.mxu0 0.0
    %384 = vmatpush1.xpose.msra.mxu0 0.0
    %385 = vmatprep.subr.mxu0 0.0
    %386 = vmatpush1.xpose.msra.mxu0 0.0
    %387 = vmatprep.subr.mxu0 0.0
    %388 = vmatpush1.xpose.msra.mxu0 0.0
    %389 = vmatprep.subr.mxu0 0.0
    %390 = vmatpush1.xpose.msra.mxu0 0.0
    %391 = vmatprep.subr.mxu0 0.0
    %392 = vmatpush1.xpose.msra.mxu0 0.0
    %393 = vmatprep.subr.mxu0 0.0
    %394 = vmatpush1.xpose.msra.mxu0 0.0
    %395 = vmatprep.subr.mxu0 0.0
    %396 = vmatpush1.xpose.msra.mxu0 0.0
    %397 = vmatprep.subr.mxu0 0.0
    %398 = vmatpush1.xpose.msra.mxu0 0.0
    %399 = vmatprep.subr.mxu0 0.0
    %400 = vmatpush1.xpose.msra.mxu0 0.0
    %401 = vmatprep.subr.mxu0 0.0
    %402 = vmatpush1.xpose.msra.mxu0 0.0
    %403 = vmatprep.subr.mxu0 0.0
    %v404 = vand.u32 %v83, 4294901760
    %v405 = vsub.f32 %v83, %v404
    %v406 = vand.u32 %v405, 4294901760
    %407 = vmatpush1.xpose.msra.mxu0 %v406
    %408 = vmatprep.subr.mxu0 0.0
    %409 = vmatpush2.xpose.msra.mxu0 0.0
    %410 = vmatprep.subr.mxu0 0.0
    %411 = vmatpush2.xpose.msra.mxu0 0.0
    %412 = vmatprep.subr.mxu0 0.0
    %413 = vmatpush2.xpose.msra.mxu0 0.0
    %414 = vmatprep.subr.mxu0 0.0
    %415 = vmatpush2.xpose.msra.mxu0 0.0
    %416 = vmatprep.subr.mxu0 0.0
    %417 = vmatpush2.xpose.msra.mxu0 0.0
    %418 = vmatprep.subr.mxu0 0.0
    %419 = vmatpush2.xpose.msra.mxu0 0.0
    %420 = vmatprep.subr.mxu0 0.0
    %421 = vmatpush2.xpose.msra.mxu0 0.0
    %422 = vmatprep.subr.mxu0 0.0
    %423 = vmatpush2.xpose.msra.mxu0 0.0
    %424 = vmatprep.subr.mxu0 0.0
    %425 = vmatpush2.xpose.msra.mxu0 0.0
    %426 = vmatprep.subr.mxu0 0.0
    %427 = vmatpush2.xpose.msra.mxu0 0.0
    %428 = vmatprep.subr.mxu0 0.0
    %429 = vmatpush2.xpose.msra.mxu0 0.0
    %430 = vmatprep.subr.mxu0 0.0
    %431 = vmatpush2.xpose.msra.mxu0 0.0
    %432 = vmatprep.subr.mxu0 0.0
    %433 = vmatpush2.xpose.msra.mxu0 0.0
    %434 = vmatprep.subr.mxu0 0.0
    %435 = vmatpush2.xpose.msra.mxu0 0.0
    %436 = vmatprep.subr.mxu0 0.0
    %437 = vmatpush2.xpose.msra.mxu0 0.0
    %438 = vmatprep.subr.mxu0 0.0
    %439 = vmatpush2.xpose.msra.mxu0 0.0
    %440 = vmatprep.mubr.f32.mxu0 0.0
    %441 = vmatmul.mubr.f32.gmra.mxu0 1.0
    %v442 = vpop.f32.mrf.mxu0
    %v443 = vadd.f32 %v370, %v442
    %v444 = vpop.f32.mrf.mxu0
    %445 = vdwg.mxu0
    %446 = vmatprep.subr.mxu0 0.0
    %447 = vmatpush1.xpose.msra.mxu0 0.0
    %448 = vmatprep.subr.mxu0 0.0
    %449 = vmatpush1.xpose.msra.mxu0 0.0
    %450 = vmatprep.subr.mxu0 0.0
    %451 = vmatpush1.xpose.msra.mxu0 0.0
    %452 = vmatprep.subr.mxu0 0.0
    %453 = vmatpush1.xpose.msra.mxu0 0.0
    %454 = vmatprep.subr.mxu0 0.0
    %455 = vmatpush1.xpose.msra.mxu0 0.0
    %456 = vmatprep.subr.mxu0 0.0
    %457 = vmatpush1.xpose.msra.mxu0 0.0
    %458 = vmatprep.subr.mxu0 0.0
    %459 = vmatpush1.xpose.msra.mxu0 0.0
    %460 = vmatprep.subr.mxu0 0.0
    %461 = vmatpush1.xpose.msra.mxu0 0.0
    %462 = vmatprep.subr.mxu0 0.0
    %463 = vmatpush1.xpose.msra.mxu0 0.0
    %464 = vmatprep.subr.mxu0 0.0
    %465 = vmatpush1.xpose.msra.mxu0 0.0
    %466 = vmatprep.subr.mxu0 0.0
    %467 = vmatpush1.xpose.msra.mxu0 0.0
    %468 = vmatprep.subr.mxu0 0.0
    %469 = vmatpush1.xpose.msra.mxu0 0.0
    %470 = vmatprep.subr.mxu0 0.0
    %471 = vmatpush1.xpose.msra.mxu0 0.0
    %472 = vmatprep.subr.mxu0 0.0
    %473 = vmatpush1.xpose.msra.mxu0 0.0
    %474 = vmatprep.subr.mxu0 0.0
    %475 = vmatpush1.xpose.msra.mxu0 0.0
    %476 = vmatprep.subr.mxu0 0.0
    %v477 = vand.u32 %v83, 4294901760
    %478 = vmatpush1.xpose.msra.mxu0 %v477
    %479 = vmatprep.subr.mxu0 0.0
    %480 = vmatpush2.xpose.msra.mxu0 0.0
    %481 = vmatprep.subr.mxu0 0.0
    %482 = vmatpush2.xpose.msra.mxu0 0.0
    %483 = vmatprep.subr.mxu0 0.0
    %484 = vmatpush2.xpose.msra.mxu0 0.0
    %485 = vmatprep.subr.mxu0 0.0
    %486 = vmatpush2.xpose.msra.mxu0 0.0
    %487 = vmatprep.subr.mxu0 0.0
    %488 = vmatpush2.xpose.msra.mxu0 0.0
    %489 = vmatprep.subr.mxu0 0.0
    %490 = vmatpush2.xpose.msra.mxu0 0.0
    %491 = vmatprep.subr.mxu0 0.0
    %492 = vmatpush2.xpose.msra.mxu0 0.0
    %493 = vmatprep.subr.mxu0 0.0
    %494 = vmatpush2.xpose.msra.mxu0 0.0
    %495 = vmatprep.subr.mxu0 0.0
    %496 = vmatpush2.xpose.msra.mxu0 0.0
    %497 = vmatprep.subr.mxu0 0.0
    %498 = vmatpush2.xpose.msra.mxu0 0.0
    %499 = vmatprep.subr.mxu0 0.0
    %500 = vmatpush2.xpose.msra.mxu0 0.0
    %501 = vmatprep.subr.mxu0 0.0
    %502 = vmatpush2.xpose.msra.mxu0 0.0
    %503 = vmatprep.subr.mxu0 0.0
    %504 = vmatpush2.xpose.msra.mxu0 0.0
    %505 = vmatprep.subr.mxu0 0.0
    %506 = vmatpush2.xpose.msra.mxu0 0.0
    %507 = vmatprep.subr.mxu0 0.0
    %508 = vmatpush2.xpose.msra.mxu0 0.0
    %509 = vmatprep.subr.mxu0 0.0
    %510 = vmatpush2.xpose.msra.mxu0 0.0
    %511 = vmatprep.mubr.f32.mxu0 0.0
    %512 = vmatmul.mubr.f32.gmra.mxu0 1.0
    %v513 = vpop.f32.mrf.mxu0
    %v514 = vadd.f32 %v443, %v513
    %v515 = vpop.f32.mrf.mxu0
    %516 = vdwg.mxu0
    %v517 = vld [vmem:[#allocation3] sm:$0xff]
    %518 = vmatprep.subr.mxu0 0.0
    %519 = vmatpush1.xpose.msra.mxu0 0.0
    %520 = vmatprep.subr.mxu0 0.0
    %521 = vmatpush1.xpose.msra.mxu0 0.0
    %522 = vmatprep.subr.mxu0 0.0
    %523 = vmatpush1.xpose.msra.mxu0 0.0
    %524 = vmatprep.subr.mxu0 0.0
    %525 = vmatpush1.xpose.msra.mxu0 0.0
    %526 = vmatprep.subr.mxu0 0.0
    %527 = vmatpush1.xpose.msra.mxu0 0.0
    %528 = vmatprep.subr.mxu0 0.0
    %529 = vmatpush1.xpose.msra.mxu0 0.0
    %530 = vmatprep.subr.mxu0 0.0
    %531 = vmatpush1.xpose.msra.mxu0 0.0
    %532 = vmatprep.subr.mxu0 0.0
    %533 = vmatpush1.xpose.msra.mxu0 0.0
    %534 = vmatprep.subr.mxu0 0.0
    %535 = vmatpush1.xpose.msra.mxu0 0.0
    %536 = vmatprep.subr.mxu0 0.0
    %537 = vmatpush1.xpose.msra.mxu0 0.0
    %538 = vmatprep.subr.mxu0 0.0
    %539 = vmatpush1.xpose.msra.mxu0 0.0
    %540 = vmatprep.subr.mxu0 0.0
    %541 = vmatpush1.xpose.msra.mxu0 0.0
    %542 = vmatprep.subr.mxu0 0.0
    %543 = vmatpush1.xpose.msra.mxu0 0.0
    %544 = vmatprep.subr.mxu0 0.0
    %545 = vmatpush1.xpose.msra.mxu0 0.0
    %546 = vmatprep.subr.mxu0 0.0
    %547 = vmatpush1.xpose.msra.mxu0 0.0
    %548 = vmatprep.subr.mxu0 0.0
    %v549 = vand.u32 %v517, 4294901760
    %550 = vmatpush1.xpose.msra.mxu0 %v549
    %551 = vmatprep.subr.mxu0 0.0
    %552 = vmatpush2.xpose.msra.mxu0 0.0
    %553 = vmatprep.subr.mxu0 0.0
    %554 = vmatpush2.xpose.msra.mxu0 0.0
    %555 = vmatprep.subr.mxu0 0.0
    %556 = vmatpush2.xpose.msra.mxu0 0.0
    %557 = vmatprep.subr.mxu0 0.0
    %558 = vmatpush2.xpose.msra.mxu0 0.0
    %559 = vmatprep.subr.mxu0 0.0
    %560 = vmatpush2.xpose.msra.mxu0 0.0
    %561 = vmatprep.subr.mxu0 0.0
    %562 = vmatpush2.xpose.msra.mxu0 0.0
    %563 = vmatprep.subr.mxu0 0.0
    %564 = vmatpush2.xpose.msra.mxu0 0.0
    %565 = vmatprep.subr.mxu0 0.0
    %566 = vmatpush2.xpose.msra.mxu0 0.0
    %567 = vmatprep.subr.mxu0 0.0
    %568 = vmatpush2.xpose.msra.mxu0 0.0
    %569 = vmatprep.subr.mxu0 0.0
    %570 = vmatpush2.xpose.msra.mxu0 0.0
    %571 = vmatprep.subr.mxu0 0.0
    %572 = vmatpush2.xpose.msra.mxu0 0.0
    %573 = vmatprep.subr.mxu0 0.0
    %574 = vmatpush2.xpose.msra.mxu0 0.0
    %575 = vmatprep.subr.mxu0 0.0
    %576 = vmatpush2.xpose.msra.mxu0 0.0
    %577 = vmatprep.subr.mxu0 0.0
    %578 = vmatpush2.xpose.msra.mxu0 0.0
    %579 = vmatprep.subr.mxu0 0.0
    %580 = vmatpush2.xpose.msra.mxu0 0.0
    %581 = vmatprep.subr.mxu0 0.0
    %582 = vmatpush2.xpose.msra.mxu0 0.0
    %583 = vmatprep.mubr.f32.mxu0 0.0
    %584 = vmatmul.mubr.f32.gmra.mxu0 0.0
    %v585 = vpop.f32.mrf.mxu0
    %v586 = vadd.f32 0.0, %v585
    %v587 = vpop.f32.mrf.mxu0
    %588 = vdwg.mxu0
    %589 = vmatprep.subr.mxu0 0.0
    %590 = vmatpush1.xpose.msra.mxu0 0.0
    %591 = vmatprep.subr.mxu0 0.0
    %592 = vmatpush1.xpose.msra.mxu0 0.0
    %593 = vmatprep.subr.mxu0 0.0
    %594 = vmatpush1.xpose.msra.mxu0 0.0
    %595 = vmatprep.subr.mxu0 0.0
    %596 = vmatpush1.xpose.msra.mxu0 0.0
    %597 = vmatprep.subr.mxu0 0.0
    %598 = vmatpush1.xpose.msra.mxu0 0.0
    %599 = vmatprep.subr.mxu0 0.0
    %600 = vmatpush1.xpose.msra.mxu0 0.0
    %601 = vmatprep.subr.mxu0 0.0
    %602 = vmatpush1.xpose.msra.mxu0 0.0
    %603 = vmatprep.subr.mxu0 0.0
    %604 = vmatpush1.xpose.msra.mxu0 0.0
    %605 = vmatprep.subr.mxu0 0.0
    %606 = vmatpush1.xpose.msra.mxu0 0.0
    %607 = vmatprep.subr.mxu0 0.0
    %608 = vmatpush1.xpose.msra.mxu0 0.0
    %609 = vmatprep.subr.mxu0 0.0
    %610 = vmatpush1.xpose.msra.mxu0 0.0
    %611 = vmatprep.subr.mxu0 0.0
    %612 = vmatpush1.xpose.msra.mxu0 0.0
    %613 = vmatprep.subr.mxu0 0.0
    %614 = vmatpush1.xpose.msra.mxu0 0.0
    %615 = vmatprep.subr.mxu0 0.0
    %616 = vmatpush1.xpose.msra.mxu0 0.0
    %617 = vmatprep.subr.mxu0 0.0
    %618 = vmatpush1.xpose.msra.mxu0 0.0
    %619 = vmatprep.subr.mxu0 0.0
    %v620 = vand.u32 %v517, 4294901760
    %v621 = vsub.f32 %v517, %v620
    %v622 = vand.u32 %v621, 4294901760
    %v623 = vsub.f32 %v621, %v622
    %v624 = vand.u32 %v623, 4294901760
    %625 = vmatpush1.xpose.msra.mxu0 %v624
    %626 = vmatprep.subr.mxu0 0.0
    %627 = vmatpush2.xpose.msra.mxu0 0.0
    %628 = vmatprep.subr.mxu0 0.0
    %629 = vmatpush2.xpose.msra.mxu0 0.0
    %630 = vmatprep.subr.mxu0 0.0
    %631 = vmatpush2.xpose.msra.mxu0 0.0
    %632 = vmatprep.subr.mxu0 0.0
    %633 = vmatpush2.xpose.msra.mxu0 0.0
    %634 = vmatprep.subr.mxu0 0.0
    %635 = vmatpush2.xpose.msra.mxu0 0.0
    %636 = vmatprep.subr.mxu0 0.0
    %637 = vmatpush2.xpose.msra.mxu0 0.0
    %638 = vmatprep.subr.mxu0 0.0
    %639 = vmatpush2.xpose.msra.mxu0 0.0
    %640 = vmatprep.subr.mxu0 0.0
    %641 = vmatpush2.xpose.msra.mxu0 0.0
    %642 = vmatprep.subr.mxu0 0.0
    %643 = vmatpush2.xpose.msra.mxu0 0.0
    %644 = vmatprep.subr.mxu0 0.0
    %645 = vmatpush2.xpose.msra.mxu0 0.0
    %646 = vmatprep.subr.mxu0 0.0
    %647 = vmatpush2.xpose.msra.mxu0 0.0
    %648 = vmatprep.subr.mxu0 0.0
    %649 = vmatpush2.xpose.msra.mxu0 0.0
    %650 = vmatprep.subr.mxu0 0.0
    %651 = vmatpush2.xpose.msra.mxu0 0.0
    %652 = vmatprep.subr.mxu0 0.0
    %653 = vmatpush2.xpose.msra.mxu0 0.0
    %654 = vmatprep.subr.mxu0 0.0
    %655 = vmatpush2.xpose.msra.mxu0 0.0
    %656 = vmatprep.subr.mxu0 0.0
    %657 = vmatpush2.xpose.msra.mxu0 0.0
    %658 = vmatprep.mubr.f32.mxu0 0.0
    %659 = vmatmul.mubr.f32.gmra.mxu0 1.0
    %v660 = vpop.f32.mrf.mxu0
    %v661 = vadd.f32 %v586, %v660
    %v662 = vpop.f32.mrf.mxu0
    %663 = vdwg.mxu0
    %664 = vmatprep.subr.mxu0 0.0
    %665 = vmatpush1.xpose.msra.mxu0 0.0
    %666 = vmatprep.subr.mxu0 0.0
    %667 = vmatpush1.xpose.msra.mxu0 0.0
    %668 = vmatprep.subr.mxu0 0.0
    %669 = vmatpush1.xpose.msra.mxu0 0.0
    %670 = vmatprep.subr.mxu0 0.0
    %671 = vmatpush1.xpose.msra.mxu0 0.0
    %672 = vmatprep.subr.mxu0 0.0
    %673 = vmatpush1.xpose.msra.mxu0 0.0
    %674 = vmatprep.subr.mxu0 0.0
    %675 = vmatpush1.xpose.msra.mxu0 0.0
    %676 = vmatprep.subr.mxu0 0.0
    %677 = vmatpush1.xpose.msra.mxu0 0.0
    %678 = vmatprep.subr.mxu0 0.0
    %679 = vmatpush1.xpose.msra.mxu0 0.0
    %680 = vmatprep.subr.mxu0 0.0
    %681 = vmatpush1.xpose.msra.mxu0 0.0
    %682 = vmatprep.subr.mxu0 0.0
    %683 = vmatpush1.xpose.msra.mxu0 0.0
    %684 = vmatprep.subr.mxu0 0.0
    %685 = vmatpush1.xpose.msra.mxu0 0.0
    %686 = vmatprep.subr.mxu0 0.0
    %687 = vmatpush1.xpose.msra.mxu0 0.0
    %688 = vmatprep.subr.mxu0 0.0
    %689 = vmatpush1.xpose.msra.mxu0 0.0
    %690 = vmatprep.subr.mxu0 0.0
    %691 = vmatpush1.xpose.msra.mxu0 0.0
    %692 = vmatprep.subr.mxu0 0.0
    %693 = vmatpush1.xpose.msra.mxu0 0.0
    %694 = vmatprep.subr.mxu0 0.0
    %v695 = vand.u32 %v517, 4294901760
    %v696 = vsub.f32 %v517, %v695
    %697 = vmatpush1.xpose.msra.mxu0 %v696
    %698 = vmatprep.subr.mxu0 0.0
    %699 = vmatpush2.xpose.msra.mxu0 0.0
    %700 = vmatprep.subr.mxu0 0.0
    %701 = vmatpush2.xpose.msra.mxu0 0.0
    %702 = vmatprep.subr.mxu0 0.0
    %703 = vmatpush2.xpose.msra.mxu0 0.0
    %704 = vmatprep.subr.mxu0 0.0
    %705 = vmatpush2.xpose.msra.mxu0 0.0
    %706 = vmatprep.subr.mxu0 0.0
    %707 = vmatpush2.xpose.msra.mxu0 0.0
    %708 = vmatprep.subr.mxu0 0.0
    %709 = vmatpush2.xpose.msra.mxu0 0.0
    %710 = vmatprep.subr.mxu0 0.0
    %711 = vmatpush2.xpose.msra.mxu0 0.0
    %712 = vmatprep.subr.mxu0 0.0
    %713 = vmatpush2.xpose.msra.mxu0 0.0
    %714 = vmatprep.subr.mxu0 0.0
    %715 = vmatpush2.xpose.msra.mxu0 0.0
    %716 = vmatprep.subr.mxu0 0.0
    %717 = vmatpush2.xpose.msra.mxu0 0.0
    %718 = vmatprep.subr.mxu0 0.0
    %719 = vmatpush2.xpose.msra.mxu0 0.0
    %720 = vmatprep.subr.mxu0 0.0
    %721 = vmatpush2.xpose.msra.mxu0 0.0
    %722 = vmatprep.subr.mxu0 0.0
    %723 = vmatpush2.xpose.msra.mxu0 0.0
    %724 = vmatprep.subr.mxu0 0.0
    %725 = vmatpush2.xpose.msra.mxu0 0.0
    %726 = vmatprep.subr.mxu0 0.0
    %727 = vmatpush2.xpose.msra.mxu0 0.0
    %728 = vmatprep.subr.mxu0 0.0
    %729 = vmatpush2.xpose.msra.mxu0 0.0
    %730 = vmatprep.mubr.f32.mxu0 0.0
    %731 = vmatmul.mubr.f32.gmra.mxu0 0.0
    %v732 = vpop.f32.mrf.mxu0
    %v733 = vadd.f32 %v661, %v732
    %v734 = vpop.f32.mrf.mxu0
    %735 = vdwg.mxu0
    %736 = vmatprep.subr.mxu0 0.0
    %737 = vmatpush1.xpose.msra.mxu0 0.0
    %738 = vmatprep.subr.mxu0 0.0
    %739 = vmatpush1.xpose.msra.mxu0 0.0
    %740 = vmatprep.subr.mxu0 0.0
    %741 = vmatpush1.xpose.msra.mxu0 0.0
    %742 = vmatprep.subr.mxu0 0.0
    %743 = vmatpush1.xpose.msra.mxu0 0.0
    %744 = vmatprep.subr.mxu0 0.0
    %745 = vmatpush1.xpose.msra.mxu0 0.0
    %746 = vmatprep.subr.mxu0 0.0
    %747 = vmatpush1.xpose.msra.mxu0 0.0
    %748 = vmatprep.subr.mxu0 0.0
    %749 = vmatpush1.xpose.msra.mxu0 0.0
    %750 = vmatprep.subr.mxu0 0.0
    %751 = vmatpush1.xpose.msra.mxu0 0.0
    %752 = vmatprep.subr.mxu0 0.0
    %753 = vmatpush1.xpose.msra.mxu0 0.0
    %754 = vmatprep.subr.mxu0 0.0
    %755 = vmatpush1.xpose.msra.mxu0 0.0
    %756 = vmatprep.subr.mxu0 0.0
    %757 = vmatpush1.xpose.msra.mxu0 0.0
    %758 = vmatprep.subr.mxu0 0.0
    %759 = vmatpush1.xpose.msra.mxu0 0.0
    %760 = vmatprep.subr.mxu0 0.0
    %761 = vmatpush1.xpose.msra.mxu0 0.0
    %762 = vmatprep.subr.mxu0 0.0
    %763 = vmatpush1.xpose.msra.mxu0 0.0
    %764 = vmatprep.subr.mxu0 0.0
    %765 = vmatpush1.xpose.msra.mxu0 0.0
    %766 = vmatprep.subr.mxu0 0.0
    %v767 = vand.u32 %v517, 4294901760
    %768 = vmatpush1.xpose.msra.mxu0 %v767
    %769 = vmatprep.subr.mxu0 0.0
    %770 = vmatpush2.xpose.msra.mxu0 0.0
    %771 = vmatprep.subr.mxu0 0.0
    %772 = vmatpush2.xpose.msra.mxu0 0.0
    %773 = vmatprep.subr.mxu0 0.0
    %774 = vmatpush2.xpose.msra.mxu0 0.0
    %775 = vmatprep.subr.mxu0 0.0
    %776 = vmatpush2.xpose.msra.mxu0 0.0
    %777 = vmatprep.subr.mxu0 0.0
    %778 = vmatpush2.xpose.msra.mxu0 0.0
    %779 = vmatprep.subr.mxu0 0.0
    %780 = vmatpush2.xpose.msra.mxu0 0.0
    %781 = vmatprep.subr.mxu0 0.0
    %782 = vmatpush2.xpose.msra.mxu0 0.0
    %783 = vmatprep.subr.mxu0 0.0
    %784 = vmatpush2.xpose.msra.mxu0 0.0
    %785 = vmatprep.subr.mxu0 0.0
    %786 = vmatpush2.xpose.msra.mxu0 0.0
    %787 = vmatprep.subr.mxu0 0.0
    %788 = vmatpush2.xpose.msra.mxu0 0.0
    %789 = vmatprep.subr.mxu0 0.0
    %790 = vmatpush2.xpose.msra.mxu0 0.0
    %791 = vmatprep.subr.mxu0 0.0
    %792 = vmatpush2.xpose.msra.mxu0 0.0
    %793 = vmatprep.subr.mxu0 0.0
    %794 = vmatpush2.xpose.msra.mxu0 0.0
    %795 = vmatprep.subr.mxu0 0.0
    %796 = vmatpush2.xpose.msra.mxu0 0.0
    %797 = vmatprep.subr.mxu0 0.0
    %798 = vmatpush2.xpose.msra.mxu0 0.0
    %799 = vmatprep.subr.mxu0 0.0
    %800 = vmatpush2.xpose.msra.mxu0 0.0
    %801 = vmatprep.mubr.f32.mxu0 0.0
    %802 = vmatmul.mubr.f32.gmra.mxu0 0.0
    %v803 = vpop.f32.mrf.mxu0
    %v804 = vadd.f32 %v733, %v803
    %v805 = vpop.f32.mrf.mxu0
    %806 = vdwg.mxu0
    %807 = vmatprep.subr.mxu0 0.0
    %808 = vmatpush1.xpose.msra.mxu0 0.0
    %809 = vmatprep.subr.mxu0 0.0
    %810 = vmatpush1.xpose.msra.mxu0 0.0
    %811 = vmatprep.subr.mxu0 0.0
    %812 = vmatpush1.xpose.msra.mxu0 0.0
    %813 = vmatprep.subr.mxu0 0.0
    %814 = vmatpush1.xpose.msra.mxu0 0.0
    %815 = vmatprep.subr.mxu0 0.0
    %816 = vmatpush1.xpose.msra.mxu0 0.0
    %817 = vmatprep.subr.mxu0 0.0
    %818 = vmatpush1.xpose.msra.mxu0 0.0
    %819 = vmatprep.subr.mxu0 0.0
    %820 = vmatpush1.xpose.msra.mxu0 0.0
    %821 = vmatprep.subr.mxu0 0.0
    %822 = vmatpush1.xpose.msra.mxu0 0.0
    %823 = vmatprep.subr.mxu0 0.0
    %824 = vmatpush1.xpose.msra.mxu0 0.0
    %825 = vmatprep.subr.mxu0 0.0
    %826 = vmatpush1.xpose.msra.mxu0 0.0
    %827 = vmatprep.subr.mxu0 0.0
    %828 = vmatpush1.xpose.msra.mxu0 0.0
    %829 = vmatprep.subr.mxu0 0.0
    %830 = vmatpush1.xpose.msra.mxu0 0.0
    %831 = vmatprep.subr.mxu0 0.0
    %832 = vmatpush1.xpose.msra.mxu0 0.0
    %833 = vmatprep.subr.mxu0 0.0
    %834 = vmatpush1.xpose.msra.mxu0 0.0
    %835 = vmatprep.subr.mxu0 0.0
    %836 = vmatpush1.xpose.msra.mxu0 0.0
    %837 = vmatprep.subr.mxu0 0.0
    %v838 = vand.u32 %v517, 4294901760
    %v839 = vsub.f32 %v517, %v838
    %v840 = vand.u32 %v839, 4294901760
    %841 = vmatpush1.xpose.msra.mxu0 %v840
    %842 = vmatprep.subr.mxu0 0.0
    %843 = vmatpush2.xpose.msra.mxu0 0.0
    %844 = vmatprep.subr.mxu0 0.0
    %845 = vmatpush2.xpose.msra.mxu0 0.0
    %846 = vmatprep.subr.mxu0 0.0
    %847 = vmatpush2.xpose.msra.mxu0 0.0
    %848 = vmatprep.subr.mxu0 0.0
    %849 = vmatpush2.xpose.msra.mxu0 0.0
    %850 = vmatprep.subr.mxu0 0.0
    %851 = vmatpush2.xpose.msra.mxu0 0.0
    %852 = vmatprep.subr.mxu0 0.0
    %853 = vmatpush2.xpose.msra.mxu0 0.0
    %854 = vmatprep.subr.mxu0 0.0
    %855 = vmatpush2.xpose.msra.mxu0 0.0
    %856 = vmatprep.subr.mxu0 0.0
    %857 = vmatpush2.xpose.msra.mxu0 0.0
    %858 = vmatprep.subr.mxu0 0.0
    %859 = vmatpush2.xpose.msra.mxu0 0.0
    %860 = vmatprep.subr.mxu0 0.0
    %861 = vmatpush2.xpose.msra.mxu0 0.0
    %862 = vmatprep.subr.mxu0 0.0
    %863 = vmatpush2.xpose.msra.mxu0 0.0
    %864 = vmatprep.subr.mxu0 0.0
    %865 = vmatpush2.xpose.msra.mxu0 0.0
    %866 = vmatprep.subr.mxu0 0.0
    %867 = vmatpush2.xpose.msra.mxu0 0.0
    %868 = vmatprep.subr.mxu0 0.0
    %869 = vmatpush2.xpose.msra.mxu0 0.0
    %870 = vmatprep.subr.mxu0 0.0
    %871 = vmatpush2.xpose.msra.mxu0 0.0
    %872 = vmatprep.subr.mxu0 0.0
    %873 = vmatpush2.xpose.msra.mxu0 0.0
    %874 = vmatprep.mubr.f32.mxu0 0.0
    %875 = vmatmul.mubr.f32.gmra.mxu0 1.0
    %v876 = vpop.f32.mrf.mxu0
    %v877 = vadd.f32 %v804, %v876
    %v878 = vpop.f32.mrf.mxu0
    %879 = vdwg.mxu0
    %880 = vmatprep.subr.mxu0 0.0
    %881 = vmatpush1.xpose.msra.mxu0 0.0
    %882 = vmatprep.subr.mxu0 0.0
    %883 = vmatpush1.xpose.msra.mxu0 0.0
    %884 = vmatprep.subr.mxu0 0.0
    %885 = vmatpush1.xpose.msra.mxu0 0.0
    %886 = vmatprep.subr.mxu0 0.0
    %887 = vmatpush1.xpose.msra.mxu0 0.0
    %888 = vmatprep.subr.mxu0 0.0
    %889 = vmatpush1.xpose.msra.mxu0 0.0
    %890 = vmatprep.subr.mxu0 0.0
    %891 = vmatpush1.xpose.msra.mxu0 0.0
    %892 = vmatprep.subr.mxu0 0.0
    %893 = vmatpush1.xpose.msra.mxu0 0.0
    %894 = vmatprep.subr.mxu0 0.0
    %895 = vmatpush1.xpose.msra.mxu0 0.0
    %896 = vmatprep.subr.mxu0 0.0
    %897 = vmatpush1.xpose.msra.mxu0 0.0
    %898 = vmatprep.subr.mxu0 0.0
    %899 = vmatpush1.xpose.msra.mxu0 0.0
    %900 = vmatprep.subr.mxu0 0.0
    %901 = vmatpush1.xpose.msra.mxu0 0.0
    %902 = vmatprep.subr.mxu0 0.0
    %903 = vmatpush1.xpose.msra.mxu0 0.0
    %904 = vmatprep.subr.mxu0 0.0
    %905 = vmatpush1.xpose.msra.mxu0 0.0
    %906 = vmatprep.subr.mxu0 0.0
    %907 = vmatpush1.xpose.msra.mxu0 0.0
    %908 = vmatprep.subr.mxu0 0.0
    %909 = vmatpush1.xpose.msra.mxu0 0.0
    %910 = vmatprep.subr.mxu0 0.0
    %v911 = vand.u32 %v517, 4294901760
    %912 = vmatpush1.xpose.msra.mxu0 %v911
    %913 = vmatprep.subr.mxu0 0.0
    %914 = vmatpush2.xpose.msra.mxu0 0.0
    %915 = vmatprep.subr.mxu0 0.0
    %916 = vmatpush2.xpose.msra.mxu0 0.0
    %917 = vmatprep.subr.mxu0 0.0
    %918 = vmatpush2.xpose.msra.mxu0 0.0
    %919 = vmatprep.subr.mxu0 0.0
    %920 = vmatpush2.xpose.msra.mxu0 0.0
    %921 = vmatprep.subr.mxu0 0.0
    %922 = vmatpush2.xpose.msra.mxu0 0.0
    %923 = vmatprep.subr.mxu0 0.0
    %924 = vmatpush2.xpose.msra.mxu0 0.0
    %925 = vmatprep.subr.mxu0 0.0
    %926 = vmatpush2.xpose.msra.mxu0 0.0
    %927 = vmatprep.subr.mxu0 0.0
    %928 = vmatpush2.xpose.msra.mxu0 0.0
    %929 = vmatprep.subr.mxu0 0.0
    %930 = vmatpush2.xpose.msra.mxu0 0.0
    %931 = vmatprep.subr.mxu0 0.0
    %932 = vmatpush2.xpose.msra.mxu0 0.0
    %933 = vmatprep.subr.mxu0 0.0
    %934 = vmatpush2.xpose.msra.mxu0 0.0
    %935 = vmatprep.subr.mxu0 0.0
    %936 = vmatpush2.xpose.msra.mxu0 0.0
    %937 = vmatprep.subr.mxu0 0.0
    %938 = vmatpush2.xpose.msra.mxu0 0.0
    %939 = vmatprep.subr.mxu0 0.0
    %940 = vmatpush2.xpose.msra.mxu0 0.0
    %941 = vmatprep.subr.mxu0 0.0
    %942 = vmatpush2.xpose.msra.mxu0 0.0
    %943 = vmatprep.subr.mxu0 0.0
    %944 = vmatpush2.xpose.msra.mxu0 0.0
    %945 = vmatprep.mubr.f32.mxu0 0.0
    %946 = vmatmul.mubr.f32.gmra.mxu0 1.0
    %v947 = vpop.f32.mrf.mxu0
    %v948 = vadd.f32 %v877, %v947
    %v949 = vpop.f32.mrf.mxu0
    %950 = vdwg.mxu0
    %v951 = vmax.f32 %v948, 1.0
    %v952 = vrcp.pop %v951
    %v953 = vmul.f32 %v514, %v952
    %vm954 = vcmask 57344
    %955 = vst.msk [vmem:[%s2] sm:$0x1] %vm954, %v953
  $region17: #{bce_logits_norm_by_each_positive.1} parent=0 // pred_fallthru
    _
  // Predicated region
  $region18: #{bce_logits_norm_by_each_positive.1} parent=0 // pred_check
    _
  $region19: #{bce_logits_norm_by_each_positive.1} parent=0 // pred_check_branch
    %957 = sbr.rel (0) target = $region21
  $region20: #{bce_logits_norm_by_each_positive.1} parent=0 // pred_region
    _
  $region21: #{bce_logits_norm_by_each_positive.1} parent=0 // pred_fallthru
    _
  // Predicated region
  $region22: #{bce_logits_norm_by_each_positive.1} parent=0 // pred_check
    _
  $region23: #{bce_logits_norm_by_each_positive.1} parent=0 // pred_check_branch
    %959 = sbr.rel (0) target = $region25
  $region24: #{bce_logits_norm_by_each_positive.1} parent=0 // pred_region
    _
  $region25: #{bce_logits_norm_by_each_positive.1} parent=0 // pred_fallthru
    _

</llo_original>
